<compile_context>
chip_gen: v7x
topology: tpu7x:2x2x1
jax: 0.10.0
libtpu: 0.0.40
codegen_flags: <defaults>
</compile_context>

<pallas_src>
import functools

import jax
import jax.numpy as jnp
from jax.experimental import pallas as pl
from jax.experimental.pallas import tpu as pltpu


_INV_SQRT2 = 0.7071067811865476


def _round_up(x, m):
    return -(-x // m) * m


def _erf(x):
    """erf via Abramowitz & Stegun 7.1.26 (max abs err ~1.5e-7).

    Built from mul/add/div/exp/select only so it lowers cleanly inside a
    Mosaic kernel (jax.lax.erf was removed from JAX; the erf primitive has no
    guaranteed Pallas-TPU lowering rule)."""
    a1 = jnp.float32(0.254829592)
    a2 = jnp.float32(-0.284496736)
    a3 = jnp.float32(1.421413741)
    a4 = jnp.float32(-1.453152027)
    a5 = jnp.float32(1.061405429)
    p = jnp.float32(0.3275911)
    ax = jnp.abs(x)
    t = 1.0 / (1.0 + p * ax)
    poly = ((((a5 * t + a4) * t + a3) * t + a2) * t + a1) * t
    y = 1.0 - poly * jnp.exp(-(ax * ax))
    return jnp.where(x >= 0, y, -y)


def _gelu_exact(x):
    # Exact GELU: 0.5 * x * (1 + erf(x / sqrt(2))) — matches ACT2FN['gelu'].
    return 0.5 * x * (1.0 + _erf(x * jnp.float32(_INV_SQRT2)))


def _epilogue(y, g_ref, out_dtype, eps, approximate_gelu):
    """GELU + RnaRMSNorm on the f32 pre-activation `y` of shape (tm, H)."""
    if approximate_gelu:
        # tanh approximation: goes to the EUP slot, cheaper on v6e/v7x where
        # the exact-erf VPU polynomial can saturate the VALU for small H.
        y = jax.nn.gelu(y, approximate=True)
    else:
        y = _gelu_exact(y)
    var = jnp.mean(y * y, axis=-1, keepdims=True)
    y = y * jax.lax.rsqrt(var + jnp.float32(eps))
    # RnaRMSNorm: cast back to the activation dtype first, then scale by gamma.
    y = y.astype(out_dtype)
    # TODO(synk): PyTorch promotes (f32 gamma * bf16 hidden) to f32 under mixed
    # precision; here the output keeps the activation dtype (identical for f32).
    return (g_ref[...] * y).astype(out_dtype)


def _kernel_resident(x_ref, wt_ref, b_ref, g_ref, o_ref, *, eps,
                     approximate_gelu):
    """nk == 1 fast path: full weight resident in VMEM, no scratch."""
    y = jnp.dot(x_ref[...], wt_ref[...], preferred_element_type=jnp.float32)
    y = y + b_ref[...].astype(jnp.float32)
    o_ref[...] = _epilogue(y, g_ref, o_ref.dtype, eps, approximate_gelu)


def _kernel_ktiled(x_ref, wt_ref, b_ref, g_ref, o_ref, acc_ref, *, eps,
                   approximate_gelu):
    """nk > 1 path: stream (tk, H) weight slabs, accumulate in f32 scratch."""
    k = pl.program_id(1)
    part = jnp.dot(x_ref[...], wt_ref[...], preferred_element_type=jnp.float32)

    @pl.when(k == 0)
    def _():
        acc_ref[...] = part            # direct write: no zero-init pass

    @pl.when(k > 0)
    def _():
        acc_ref[...] += part

    @pl.when(k == pl.num_programs(1) - 1)
    def _():
        y = acc_ref[...] + b_ref[...].astype(jnp.float32)   # bias in epilogue
        o_ref[...] = _epilogue(y, g_ref, o_ref.dtype, eps, approximate_gelu)


def prepare_params(dense_w, dense_b, ln_w, *, compute_dtype=None):
    """One-time parameter prep (do NOT call per forward).

    dense_w: [H, H] in nn.Linear layout (out, in); transposed once here so the
    kernel never pays a per-call HxH transpose. Optionally cast the weight to
    `compute_dtype` (e.g. jnp.bfloat16) once — on v5e this is the biggest
    matmul lever, and on v7x it halves the resident-weight VMEM footprint.
    The wrapper casts the activations to match so the dot never promotes."""
    wt = dense_w.T
    if compute_dtype is not None:
        wt = wt.astype(compute_dtype)
    return wt, dense_b.reshape(1, -1), ln_w.reshape(1, -1)


def _vmem_capacity_bytes():
    try:
        return int(pltpu.get_tpu_info().vmem_capacity_bytes)
    except Exception:
        return 64 * 1024 * 1024        # conservative: v7x per-TensorCore VMEM


def _sublane_align(dtype):
    # Sublane packing: f32 -> 8 rows / vreg, bf16 -> 16, int8/fp8 -> 32.
    return max(8, 32 // jnp.dtype(dtype).itemsize)


def _footprint_bytes(tm, tk, H, nk, itemx, itemw, itemo, single_buffer_w):
    fp = 2 * tm * tk * itemx                     # double-buffered x tile
    fp += 2 * tm * H * itemo                     # double-buffered out tile
    if nk == 1:
        fp += (1 if single_buffer_w else 2) * H * H * itemw   # resident weight
    else:
        fp += 2 * tk * H * itemw                 # streamed weight slabs
        fp += tm * H * 4                         # f32 accumulator scratch
    fp += 4 * H * 8                              # bias + gamma (generous)
    return fp


def head_transform(hidden_states, wt, b2d, g2d, *, eps=1e-6, tm=512, nk=None,
                   approximate_gelu=False):
    """hidden_states: [B, S, H]; wt: [H, H] pre-transposed weight (y = x @ wt);
    b2d: [1, H] bias; g2d: [1, H] RMSNorm gamma.

    nk=None auto-selects: prefer nk=1 (weight fully VMEM-resident and
    single-buffered, fetched from HBM exactly once) and only fall back to
    K-tiling when the resident weight plus tiles would not fit VMEM."""
    B, S, H = hidden_states.shape
    M = B * S
    assert wt.shape == (H, H)

    x2d = hidden_states.reshape(M, H)
    out_dtype = hidden_states.dtype
    if x2d.dtype != wt.dtype:
        # Keep dot operands in one dtype so jnp.dot never silently promotes a
        # bf16 weight back to f32 per tile.
        x2d = x2d.astype(wt.dtype)

    itemx = x2d.dtype.itemsize
    itemw = wt.dtype.itemsize
    itemo = jnp.dtype(out_dtype).itemsize
    align = _sublane_align(x2d.dtype)

    vmem_cap = _vmem_capacity_bytes()
    budget = int(vmem_cap * 0.85)

    # ---- choose nk: prefer a fully resident, single-buffered weight ---------
    if nk is None:
        nk = 1
        if _footprint_bytes(align, H, H, 1, itemx, itemw, itemo, True) > budget:
            for cand in (2, 4, 8, 16, 32):
                if H % cand == 0 and (H // cand) % 128 == 0:
                    nk = cand
                    if _footprint_bytes(align, H // cand, H, cand, itemx,
                                        itemw, itemo, False) <= budget:
                        break
    assert H % nk == 0, "hidden size must be divisible by nk"
    tk = H // nk
    if nk > 1:
        assert tk % 128 == 0, "K tiles must be lane-aligned (multiple of 128)"

    # ---- choose tm: as large as the VMEM budget allows, sublane-aligned -----
    fixed = _footprint_bytes(0, tk, H, nk, itemx, itemw, itemo, True)
    per_row = 2 * tk * itemx + 2 * H * itemo + (H * 4 if nk > 1 else 0)
    tm_budget = max(align, ((budget - fixed) // max(per_row, 1) // align) * align)
    tm_sel = max(align, min((int(tm) // align) * align, tm_budget,
                            _round_up(M, align)))
    # Megacore: v7x shards the 'parallel' row axis over 2 TensorCores — make
    # sure there are >= 2 row tiles whenever M is big enough to split.
    if -(-M // tm_sel) == 1 and M > align:
        tm_sel = max(align, _round_up(-(-M // 2), align))

    n_row_tiles = -(-M // tm_sel)
    m_pad = n_row_tiles * tm_sel
    if m_pad != M:
        x2d = jnp.pad(x2d, ((0, m_pad - M), (0, 0)))

    cost = pl.CostEstimate(
        flops=2 * m_pad * H * H,
        transcendentals=m_pad * (H + 1),                 # erf exp + rsqrt
        bytes_accessed=(m_pad * H * itemx
                        + (n_row_tiles if nk > 1 else 1) * H * H * itemw
                        + m_pad * H * itemo
                        + 2 * H * 8))

    def _run(single_buffer_consts):
        def const_spec(shape, index_map):
            # Blocks whose index never changes don't need double-buffering.
            if single_buffer_consts:
                return pl.BlockSpec(shape, index_map,
                                    pipeline_mode=pl.Buffered(1))
            return pl.BlockSpec(shape, index_map)

        vmem_need = _footprint_bytes(tm_sel, tk, H, nk, itemx, itemw, itemo,
                                     single_buffer_consts)
        vmem_limit = int(min(vmem_cap,
                             max(vmem_need * 5 // 4, 32 * 1024 * 1024)))

        if nk == 1:
            grid = (n_row_tiles,)
            in_specs = [
                pl.BlockSpec((tm_sel, H), lambda i: (i, 0)),     # x rows
                const_spec((H, H), lambda i: (0, 0)),            # resident W^T
                const_spec((1, H), lambda i: (0, 0)),            # bias
                const_spec((1, H), lambda i: (0, 0)),            # gamma
            ]
            out_specs = pl.BlockSpec((tm_sel, H), lambda i: (i, 0))
            scratch = []
            kern = functools.partial(_kernel_resident, eps=eps,
                                     approximate_gelu=approximate_gelu)
            dims = ("parallel",)
        else:
            grid = (n_row_tiles, nk)
            in_specs = [
                pl.BlockSpec((tm_sel, tk), lambda i, k: (i, k)),  # x rows
                pl.BlockSpec((tk, H), lambda i, k: (k, 0)),       # weight slab
                const_spec((1, H), lambda i, k: (0, 0)),          # bias
                const_spec((1, H), lambda i, k: (0, 0)),          # gamma
            ]
            out_specs = pl.BlockSpec((tm_sel, H), lambda i, k: (i, 0))
            scratch = [pltpu.VMEM((tm_sel, H), jnp.float32)]
            kern = functools.partial(_kernel_ktiled, eps=eps,
                                     approximate_gelu=approximate_gelu)
            dims = ("parallel", "arbitrary")

        return pl.pallas_call(
            kern,
            out_shape=jax.ShapeDtypeStruct((m_pad, H), out_dtype),
            grid_spec=pltpu.PrefetchScalarGridSpec(
                num_scalar_prefetch=0,
                grid=grid,
                in_specs=in_specs,
                out_specs=out_specs,
                scratch_shapes=scratch,
            ),
            compiler_params=pltpu.CompilerParams(
                dimension_semantics=dims,
                vmem_limit_bytes=vmem_limit),
            cost_estimate=cost,
        )(x2d, wt, b2d, g2d)

    try:
        out2d = _run(True)
    except Exception:
        # Fallback for JAX versions without BlockSpec(pipeline_mode=...) or
        # Buffered(1): same numerics, default double-buffering.
        out2d = _run(False)

    if m_pad != M:
        out2d = out2d[:M]
    return out2d.reshape(B, S, H)


def _reference(hidden_states, dense_w, dense_b, ln_w, eps=1e-6):
    # Pure-JAX reference matching the PyTorch module:
    # Linear -> exact GELU -> RnaRMSNorm.
    from jax.scipy.special import erf as jsp_erf
    y = jnp.einsum("bsh,oh->bso",
                   hidden_states.astype(jnp.float32),
                   dense_w.astype(jnp.float32),
                   precision=jax.lax.Precision.HIGHEST) + dense_b
    y = 0.5 * y * (1.0 + jsp_erf(y * jnp.float32(_INV_SQRT2)))
    var = jnp.mean(y * y, axis=-1, keepdims=True)
    yn = y * jax.lax.rsqrt(var + jnp.float32(eps))
    yn = yn.astype(hidden_states.dtype)
    return (ln_w * yn).astype(hidden_states.dtype)


if __name__ == "__main__":
    key = jax.random.PRNGKey(0)
    k_x, k_w, k_b, k_g, k_x2, k_w2, k_b2, k_g2 = jax.random.split(key, 8)

    # ---- small-shape check of the weight-resident (nk == 1) fast path -------
    B, S, H = 2, 8, 32
    x = jax.random.normal(k_x, (B, S, H), dtype=jnp.float32)
    dense_w = jax.random.normal(k_w, (H, H), dtype=jnp.float32) * 0.05
    dense_b = jax.random.normal(k_b, (H,), dtype=jnp.float32) * 0.01
    ln_w = 1.0 + 0.1 * jax.random.normal(k_g, (H,), dtype=jnp.float32)

    wt, b2d, g2d = prepare_params(dense_w, dense_b, ln_w)
    out = jax.block_until_ready(head_transform(x, wt, b2d, g2d))
    ref = _reference(x, dense_w, dense_b, ln_w)
    assert out.shape == (B, S, H)
    assert out.dtype == x.dtype
    # Tolerance covers possible MXU precision-path differences between the
    # Pallas matmul and the (HIGHEST-precision) XLA reference einsum.
    assert jnp.allclose(out, ref, atol=5e-3, rtol=5e-3), "nk=1 path mismatch"

    # ---- also exercise the K-tiled (nk > 1) streaming path ------------------
    H2 = 256
    x2 = jax.random.normal(k_x2, (B, S, H2), dtype=jnp.float32)
    dense_w2 = jax.random.normal(k_w2, (H2, H2), dtype=jnp.float32) * 0.02
    dense_b2 = jax.random.normal(k_b2, (H2,), dtype=jnp.float32) * 0.01
    ln_w2 = 1.0 + 0.1 * jax.random.normal(k_g2, (H2,), dtype=jnp.float32)
    wt2, b2d2, g2d2 = prepare_params(dense_w2, dense_b2, ln_w2)
    out2 = jax.block_until_ready(head_transform(x2, wt2, b2d2, g2d2, nk=2))
    ref2 = _reference(x2, dense_w2, dense_b2, ln_w2)
    assert jnp.allclose(out2, ref2, atol=5e-3, rtol=5e-3), "nk>1 path mismatch"

    print("KERNEL_OK")
</pallas_src>

<mosaic_0001>
module attributes {stable_mosaic.version = 11 : i64} {
  func.func @_kernel_resident(%arg0: i32, %arg1: memref<8x32xf32, #tpu.memory_space<vmem>>, %arg2: memref<32x32xf32, #tpu.memory_space<vmem>>, %arg3: memref<1x32xf32, #tpu.memory_space<vmem>>, %arg4: memref<1x32xf32, #tpu.memory_space<vmem>>, %arg5: memref<8x32xf32, #tpu.memory_space<vmem>>) attributes {dimension_semantics = [#tpu.dimension_semantics<parallel>], iteration_bounds = array<i64: 2>, scalar_prefetch = 0 : i64, scratch_operands = 0 : i64, tpu.core_type = #tpu.core_type<tc>, window_params = [{transform_indices = @transform_0, window_bounds = array<i64: 8, 32>}, {pipeline_mode = #tpu.pipeline_mode<synchronous>, transform_indices = @transform_1, window_bounds = array<i64: 32, 32>}, {pipeline_mode = #tpu.pipeline_mode<synchronous>, transform_indices = @transform_2, window_bounds = array<i64: 1, 32>}, {pipeline_mode = #tpu.pipeline_mode<synchronous>, transform_indices = @transform_3, window_bounds = array<i64: 1, 32>}, {transform_indices = @transform_4, window_bounds = array<i64: 8, 32>}]} {
    %c0 = arith.constant 0 : index
    %c0_0 = arith.constant 0 : index
    %0 = vector.load %arg1[%c0, %c0_0] : memref<8x32xf32, #tpu.memory_space<vmem>>, vector<8x32xf32>
    %c0_1 = arith.constant 0 : index
    %c0_2 = arith.constant 0 : index
    %1 = vector.load %arg2[%c0_1, %c0_2] : memref<32x32xf32, #tpu.memory_space<vmem>>, vector<32x32xf32>
    %cst = arith.constant dense<0.000000e+00> : vector<8x32xf32>
    %2 = tpu.matmul %0, %1, %cst {dimension_numbers = #tpu.dot_dimension_numbers<[1], [0], [0], [1], [0, 0, 1, 1], [], []>} : vector<8x32xf32>, vector<32x32xf32>, vector<8x32xf32> -> vector<8x32xf32>
    %c0_3 = arith.constant 0 : index
    %c0_4 = arith.constant 0 : index
    %3 = vector.load %arg3[%c0_3, %c0_4] : memref<1x32xf32, #tpu.memory_space<vmem>>, vector<1x32xf32>
    %4 = vector.broadcast %3 : vector<1x32xf32> to vector<8x32xf32>
    %5 = arith.addf %2, %4 : vector<8x32xf32>
    %cst_5 = arith.constant 5.000000e-01 : f32
    %6 = vector.broadcast %cst_5 : f32 to vector<8x32xf32>
    %7 = arith.mulf %6, %5 : vector<8x32xf32>
    %cst_6 = arith.constant 0.707106769 : f32
    %8 = vector.broadcast %cst_6 : f32 to vector<8x32xf32>
    %9 = arith.mulf %5, %8 : vector<8x32xf32>
    %10 = math.absf %9 : vector<8x32xf32>
    %cst_7 = arith.constant 0.327591091 : f32
    %11 = vector.broadcast %cst_7 : f32 to vector<8x32xf32>
    %12 = arith.mulf %11, %10 : vector<8x32xf32>
    %cst_8 = arith.constant 1.000000e+00 : f32
    %13 = vector.broadcast %cst_8 : f32 to vector<8x32xf32>
    %14 = arith.addf %13, %12 : vector<8x32xf32>
    %cst_9 = arith.constant 1.000000e+00 : f32
    %15 = vector.broadcast %cst_9 : f32 to vector<8x32xf32>
    %16 = arith.divf %15, %14 : vector<8x32xf32>
    %cst_10 = arith.constant 1.06140542 : f32
    %17 = vector.broadcast %cst_10 : f32 to vector<8x32xf32>
    %18 = arith.mulf %17, %16 : vector<8x32xf32>
    %cst_11 = arith.constant -1.45315206 : f32
    %19 = vector.broadcast %cst_11 : f32 to vector<8x32xf32>
    %20 = arith.addf %18, %19 : vector<8x32xf32>
    %21 = arith.mulf %20, %16 : vector<8x32xf32>
    %cst_12 = arith.constant 1.42141378 : f32
    %22 = vector.broadcast %cst_12 : f32 to vector<8x32xf32>
    %23 = arith.addf %21, %22 : vector<8x32xf32>
    %24 = arith.mulf %23, %16 : vector<8x32xf32>
    %cst_13 = arith.constant -0.284496725 : f32
    %25 = vector.broadcast %cst_13 : f32 to vector<8x32xf32>
    %26 = arith.addf %24, %25 : vector<8x32xf32>
    %27 = arith.mulf %26, %16 : vector<8x32xf32>
    %cst_14 = arith.constant 0.254829586 : f32
    %28 = vector.broadcast %cst_14 : f32 to vector<8x32xf32>
    %29 = arith.addf %27, %28 : vector<8x32xf32>
    %30 = arith.mulf %29, %16 : vector<8x32xf32>
    %31 = arith.mulf %10, %10 : vector<8x32xf32>
    %cst_15 = arith.constant 0.000000e+00 : f32
    %32 = vector.broadcast %cst_15 : f32 to vector<8x32xf32>
    %33 = arith.subf %32, %31 : vector<8x32xf32>
    %34 = math.exp %33 : vector<8x32xf32>
    %35 = arith.mulf %30, %34 : vector<8x32xf32>
    %cst_16 = arith.constant 1.000000e+00 : f32
    %36 = vector.broadcast %cst_16 : f32 to vector<8x32xf32>
    %37 = arith.subf %36, %35 : vector<8x32xf32>
    %cst_17 = arith.constant 0.000000e+00 : f32
    %38 = vector.broadcast %cst_17 : f32 to vector<8x32xf32>
    %39 = arith.cmpf oge, %9, %38 : vector<8x32xf32>
    %cst_18 = arith.constant 0.000000e+00 : f32
    %40 = vector.broadcast %cst_18 : f32 to vector<8x32xf32>
    %41 = arith.subf %40, %37 : vector<8x32xf32>
    %42 = arith.select %39, %37, %41 : vector<8x32xi1>, vector<8x32xf32>
    %cst_19 = arith.constant 1.000000e+00 : f32
    %43 = vector.broadcast %cst_19 : f32 to vector<8x32xf32>
    %44 = arith.addf %43, %42 : vector<8x32xf32>
    %45 = arith.mulf %7, %44 : vector<8x32xf32>
    %46 = arith.mulf %45, %45 : vector<8x32xf32>
    %cst_20 = arith.constant dense<0.000000e+00> : vector<8xf32>
    %47 = vector.multi_reduction <add>, %46, %cst_20 [1] : vector<8x32xf32> to vector<8xf32>
    %48 = vector.shape_cast %47 : vector<8xf32> to vector<8x1xf32>
    %cst_21 = arith.constant 3.200000e+01 : f32
    %49 = vector.broadcast %cst_21 : f32 to vector<8x1xf32>
    %50 = arith.divf %48, %49 : vector<8x1xf32>
    %cst_22 = arith.constant 9.99999997E-7 : f32
    %51 = vector.broadcast %cst_22 : f32 to vector<8x1xf32>
    %52 = arith.addf %50, %51 : vector<8x1xf32>
    %53 = math.rsqrt %52 : vector<8x1xf32>
    %54 = vector.broadcast %53 : vector<8x1xf32> to vector<8x32xf32>
    %55 = arith.mulf %45, %54 : vector<8x32xf32>
    %c0_23 = arith.constant 0 : index
    %c0_24 = arith.constant 0 : index
    %56 = vector.load %arg4[%c0_23, %c0_24] : memref<1x32xf32, #tpu.memory_space<vmem>>, vector<1x32xf32>
    %57 = vector.broadcast %56 : vector<1x32xf32> to vector<8x32xf32>
    %58 = arith.mulf %57, %55 : vector<8x32xf32>
    %c0_25 = arith.constant 0 : index
    %c0_26 = arith.constant 0 : index
    %59 = vector.load %arg5[%c0_25, %c0_26] : memref<8x32xf32, #tpu.memory_space<vmem>>, vector<8x32xf32>
    tpu.vector_store %arg5[%c0_25, %c0_26], %58 {strides = array<i32>} : memref<8x32xf32, #tpu.memory_space<vmem>>, vector<8x32xf32>,
    return
  }
  func.func @transform_0(%arg0: i32) -> (i32, i32) {
    %c0_i32 = arith.constant 0 : i32
    %c0_i32_0 = arith.constant 0 : i32
    return %arg0, %c0_i32 : i32, i32
  }
  func.func @transform_1(%arg0: i32) -> (i32, i32) {
    %c0_i32 = arith.constant 0 : i32
    %c0_i32_0 = arith.constant 0 : i32
    %c0_i32_1 = arith.constant 0 : i32
    return %c0_i32, %c0_i32_0 : i32, i32
  }
  func.func @transform_2(%arg0: i32) -> (i32, i32) {
    %c0_i32 = arith.constant 0 : i32
    %c0_i32_0 = arith.constant 0 : i32
    %c0_i32_1 = arith.constant 0 : i32
    return %c0_i32, %c0_i32_0 : i32, i32
  }
  func.func @transform_3(%arg0: i32) -> (i32, i32) {
    %c0_i32 = arith.constant 0 : i32
    %c0_i32_0 = arith.constant 0 : i32
    %c0_i32_1 = arith.constant 0 : i32
    return %c0_i32, %c0_i32_0 : i32, i32
  }
  func.func @transform_4(%arg0: i32) -> (i32, i32) {
    %c0_i32 = arith.constant 0 : i32
    %c0_i32_0 = arith.constant 0 : i32
    return %arg0, %c0_i32 : i32, i32
  }
}

module attributes {stable_mosaic.version = 11 : i64} {
  func.func @_kernel_resident(%arg0: i32, %arg1: memref<8x32xf32, #tpu.memory_space<vmem>>, %arg2: memref<32x32xf32, #tpu.memory_space<vmem>>, %arg3: memref<1x32xf32, #tpu.memory_space<vmem>>, %arg4: memref<1x32xf32, #tpu.memory_space<vmem>>, %arg5: memref<8x32xf32, #tpu.memory_space<vmem>>) attributes {dimension_semantics = [#tpu.dimension_semantics<parallel>], iteration_bounds = array<i64: 2>, scalar_prefetch = 0 : i64, scratch_operands = 0 : i64, tpu.core_type = #tpu.core_type<tc>, window_params = [{transform_indices = @transform_0, window_bounds = array<i64: 8, 32>}, {pipeline_mode = #tpu.pipeline_mode<synchronous>, transform_indices = @transform_1, window_bounds = array<i64: 32, 32>}, {pipeline_mode = #tpu.pipeline_mode<synchronous>, transform_indices = @transform_2, window_bounds = array<i64: 1, 32>}, {pipeline_mode = #tpu.pipeline_mode<synchronous>, transform_indices = @transform_3, window_bounds = array<i64: 1, 32>}, {transform_indices = @transform_4, window_bounds = array<i64: 8, 32>}]} {
    %c0 = arith.constant 0 : index
    %c0_0 = arith.constant 0 : index
    %0 = vector.load %arg1[%c0, %c0_0] : memref<8x32xf32, #tpu.memory_space<vmem>>, vector<8x32xf32>
    %c0_1 = arith.constant 0 : index
    %c0_2 = arith.constant 0 : index
    %1 = vector.load %arg2[%c0_1, %c0_2] : memref<32x32xf32, #tpu.memory_space<vmem>>, vector<32x32xf32>
    %cst = arith.constant dense<0.000000e+00> : vector<8x32xf32>
    %2 = tpu.matmul %0, %1, %cst {dimension_numbers = #tpu.dot_dimension_numbers<[1], [0], [0], [1], [0, 0, 1, 1], [], []>} : vector<8x32xf32>, vector<32x32xf32>, vector<8x32xf32> -> vector<8x32xf32>
    %c0_3 = arith.constant 0 : index
    %c0_4 = arith.constant 0 : index
    %3 = vector.load %arg3[%c0_3, %c0_4] : memref<1x32xf32, #tpu.memory_space<vmem>>, vector<1x32xf32>
    %4 = vector.broadcast %3 : vector<1x32xf32> to vector<8x32xf32>
    %5 = arith.addf %2, %4 : vector<8x32xf32>
    %cst_5 = arith.constant 5.000000e-01 : f32
    %6 = vector.broadcast %cst_5 : f32 to vector<8x32xf32>
    %7 = arith.mulf %6, %5 : vector<8x32xf32>
    %cst_6 = arith.constant 0.707106769 : f32
    %8 = vector.broadcast %cst_6 : f32 to vector<8x32xf32>
    %9 = arith.mulf %5, %8 : vector<8x32xf32>
    %10 = math.absf %9 : vector<8x32xf32>
    %cst_7 = arith.constant 0.327591091 : f32
    %11 = vector.broadcast %cst_7 : f32 to vector<8x32xf32>
    %12 = arith.mulf %11, %10 : vector<8x32xf32>
    %cst_8 = arith.constant 1.000000e+00 : f32
    %13 = vector.broadcast %cst_8 : f32 to vector<8x32xf32>
    %14 = arith.addf %13, %12 : vector<8x32xf32>
    %cst_9 = arith.constant 1.000000e+00 : f32
    %15 = vector.broadcast %cst_9 : f32 to vector<8x32xf32>
    %16 = arith.divf %15, %14 : vector<8x32xf32>
    %cst_10 = arith.constant 1.06140542 : f32
    %17 = vector.broadcast %cst_10 : f32 to vector<8x32xf32>
    %18 = arith.mulf %17, %16 : vector<8x32xf32>
    %cst_11 = arith.constant -1.45315206 : f32
    %19 = vector.broadcast %cst_11 : f32 to vector<8x32xf32>
    %20 = arith.addf %18, %19 : vector<8x32xf32>
    %21 = arith.mulf %20, %16 : vector<8x32xf32>
    %cst_12 = arith.constant 1.42141378 : f32
    %22 = vector.broadcast %cst_12 : f32 to vector<8x32xf32>
    %23 = arith.addf %21, %22 : vector<8x32xf32>
    %24 = arith.mulf %23, %16 : vector<8x32xf32>
    %cst_13 = arith.constant -0.284496725 : f32
    %25 = vector.broadcast %cst_13 : f32 to vector<8x32xf32>
    %26 = arith.addf %24, %25 : vector<8x32xf32>
    %27 = arith.mulf %26, %16 : vector<8x32xf32>
    %cst_14 = arith.constant 0.254829586 : f32
    %28 = vector.broadcast %cst_14 : f32 to vector<8x32xf32>
    %29 = arith.addf %27, %28 : vector<8x32xf32>
    %30 = arith.mulf %29, %16 : vector<8x32xf32>
    %31 = arith.mulf %10, %10 : vector<8x32xf32>
    %cst_15 = arith.constant 0.000000e+00 : f32
    %32 = vector.broadcast %cst_15 : f32 to vector<8x32xf32>
    %33 = arith.subf %32, %31 : vector<8x32xf32>
    %34 = math.exp %33 : vector<8x32xf32>
    %35 = arith.mulf %30, %34 : vector<8x32xf32>
    %cst_16 = arith.constant 1.000000e+00 : f32
    %36 = vector.broadcast %cst_16 : f32 to vector<8x32xf32>
    %37 = arith.subf %36, %35 : vector<8x32xf32>
    %cst_17 = arith.constant 0.000000e+00 : f32
    %38 = vector.broadcast %cst_17 : f32 to vector<8x32xf32>
    %39 = arith.cmpf oge, %9, %38 : vector<8x32xf32>
    %cst_18 = arith.constant 0.000000e+00 : f32
    %40 = vector.broadcast %cst_18 : f32 to vector<8x32xf32>
    %41 = arith.subf %40, %37 : vector<8x32xf32>
    %42 = arith.select %39, %37, %41 : vector<8x32xi1>, vector<8x32xf32>
    %cst_19 = arith.constant 1.000000e+00 : f32
    %43 = vector.broadcast %cst_19 : f32 to vector<8x32xf32>
    %44 = arith.addf %43, %42 : vector<8x32xf32>
    %45 = arith.mulf %7, %44 : vector<8x32xf32>
    %46 = arith.mulf %45, %45 : vector<8x32xf32>
    %cst_20 = arith.constant dense<0.000000e+00> : vector<8xf32>
    %47 = vector.multi_reduction <add>, %46, %cst_20 [1] : vector<8x32xf32> to vector<8xf32>
    %48 = vector.shape_cast %47 : vector<8xf32> to vector<8x1xf32>
    %cst_21 = arith.constant 3.200000e+01 : f32
    %49 = vector.broadcast %cst_21 : f32 to vector<8x1xf32>
    %50 = arith.divf %48, %49 : vector<8x1xf32>
    %cst_22 = arith.constant 9.99999997E-7 : f32
    %51 = vector.broadcast %cst_22 : f32 to vector<8x1xf32>
    %52 = arith.addf %50, %51 : vector<8x1xf32>
    %53 = math.rsqrt %52 : vector<8x1xf32>
    %54 = vector.broadcast %53 : vector<8x1xf32> to vector<8x32xf32>
    %55 = arith.mulf %45, %54 : vector<8x32xf32>
    %c0_23 = arith.constant 0 : index
    %c0_24 = arith.constant 0 : index
    %56 = vector.load %arg4[%c0_23, %c0_24] : memref<1x32xf32, #tpu.memory_space<vmem>>, vector<1x32xf32>
    %57 = vector.broadcast %56 : vector<1x32xf32> to vector<8x32xf32>
    %58 = arith.mulf %57, %55 : vector<8x32xf32>
    %c0_25 = arith.constant 0 : index
    %c0_26 = arith.constant 0 : index
    %59 = vector.load %arg5[%c0_25, %c0_26] : memref<8x32xf32, #tpu.memory_space<vmem>>, vector<8x32xf32>
    tpu.vector_store %arg5[%c0_25, %c0_26], %58 {strides = array<i32>} : memref<8x32xf32, #tpu.memory_space<vmem>>, vector<8x32xf32>,
    return
  }
  func.func @transform_0(%arg0: i32) -> (i32, i32) {
    %c0_i32 = arith.constant 0 : i32
    %c0_i32_0 = arith.constant 0 : i32
    return %arg0, %c0_i32 : i32, i32
  }
  func.func @transform_1(%arg0: i32) -> (i32, i32) {
    %c0_i32 = arith.constant 0 : i32
    %c0_i32_0 = arith.constant 0 : i32
    %c0_i32_1 = arith.constant 0 : i32
    return %c0_i32, %c0_i32_0 : i32, i32
  }
  func.func @transform_2(%arg0: i32) -> (i32, i32) {
    %c0_i32 = arith.constant 0 : i32
    %c0_i32_0 = arith.constant 0 : i32
    %c0_i32_1 = arith.constant 0 : i32
    return %c0_i32, %c0_i32_0 : i32, i32
  }
  func.func @transform_3(%arg0: i32) -> (i32, i32) {
    %c0_i32 = arith.constant 0 : i32
    %c0_i32_0 = arith.constant 0 : i32
    %c0_i32_1 = arith.constant 0 : i32
    return %c0_i32, %c0_i32_0 : i32, i32
  }
  func.func @transform_4(%arg0: i32) -> (i32, i32) {
    %c0_i32 = arith.constant 0 : i32
    %c0_i32_0 = arith.constant 0 : i32
    return %arg0, %c0_i32 : i32, i32
  }
}

</mosaic_0001>

<llo_original>
// kernel: tpu_custom_call.1
$region0: #{tpu_custom_call.1}
  #allocation0 [shape = 'u32[]', space=smem, size = 0x4, offset = 0x4, fixed_abs, tag = 'smem constant byte address 0x4 - core index']
  #allocation1 [shape = 'u32[144,128]{1,0:T(1,128)}', space=vmem, size = 0x12000, scoped, tag = 'internal scratch']
  %s0 = inlined_call_operand.hbm [shape: f32[16,32], index: 0, kind: input, shape index: {}]
  %s1 = inlined_call_operand.hbm [shape: f32[32,32], index: 1, kind: input, shape index: {}]
  %s2 = inlined_call_operand.vmem [shape: f32[1,32], index: 2, kind: input, shape index: {}]
  %s3 = inlined_call_operand.vmem [shape: f32[1,32], index: 3, kind: input, shape index: {}]
  %s4 = inlined_call_operand.hbm [shape: f32[16,32], index: 4, kind: output, shape index: {}]
  %s5 = sld [smem:[#allocation0]]
  $region57: #{tpu_custom_call.1} parent=0
    _
  %s7 = ssub.s32 1, %s5
  %s8 = scalar_select 0, %s7, %s5
  $region1: #{tpu_custom_call.1} parent=0
    #allocation2 [shape = 'u8[8192]{0}', space=vmem, size = 0x2000, scoped, tag = 'input window, operand 0']
    #allocation3 [shape = 's32[2]{0}', space=sflag, size = 0x8, scoped, tag = 'scoped memory for tpu_custom_call.1']
    #allocation4 [shape = 's32[2]{0}', space=sflag, size = 0x8, scoped, tag = 'scoped memory for tpu_custom_call.1']
    #allocation5 [shape = 'u8[16384]{0}', space=vmem, size = 0x4000, scoped, tag = 'input window, operand 1, single buffered']
    #allocation6 [shape = 's32[1]{0}', space=sflag, size = 0x4, scoped, tag = 'scoped memory for tpu_custom_call.1']
    #allocation7 [shape = 'u8[8192]{0}', space=vmem, size = 0x2000, scoped, tag = 'output window, operand 0']
    %9 = vsyncpa [#allocation3], 0
    %s10 = scalar_lea.sflag [#allocation3], 1
    %11 = vsyncpa %s10, 0
    %12 = vsyncpa [#allocation6], 0
    %13 = vsyncpa [#allocation4], 0
    %s14 = scalar_lea.sflag [#allocation4], 1
    %15 = vsyncpa %s14, 0
    loop: start=0, step=1, limit=4
    $region2: #{tpu_custom_call.1} parent=1 // loop_pre_header
      _
    $region3: #{tpu_custom_call.1} parent=1 // loop_header
      %s17 = sphi 0, %s21
      %p18 = scmp.ge.s32.totalorder %s17, 4
      %s27 = sphi 0, %s29
      %s30 = sphi 0, %s27
      %s31 = sphi 0, %s30
      %s47 = sphi 0, %s31
      %s51 = sphi 0, %s51
      %s53 = sphi 0, %s51
      %s54 = sphi 0, %s53
      %s68 = sphi 0, %s54
      %s72 = sphi 0, %s72
      %s74 = sphi 0, %s72
      %s75 = sphi 0, %s74
      %s89 = sphi 0, %s75
      %s93 = sphi 0, %s93
      %s95 = sphi 0, %s93
      %s96 = sphi 0, %s95
      %s110 = sphi 0, %s96
      %s116 = sphi 0, %s118
      %s119 = sphi 0, %s116
      %s120 = sphi 0, %s119
      %s136 = sphi 0, %s120
    $region4: #{tpu_custom_call.1} parent=1 // loop_header_branch
      %20 = sbr.rel (%p18) target = $region8
    $region5: #{tpu_custom_call.1} parent=1 // loop_body
      %s22 = ssub.s32 %s17, 1
      %s23 = ssub.s32 %s17, 2
      %s24 = sadd.s32 %s17, 1
      %s25 = ssub.s32 %s17, %s24
      %p26 = scmp.eq.s32.totalorder %s25, 0
      %s28 = sadd.s32 %s27, 1
      %s29 = scalar_select %p26, %s27, %s28
      %p32 = pneg %p26
      %p33 = scmp.eq.s32.totalorder %s17, 1
      %p34 = por %p32, %p33
      %p35 = scmp.ne.s32.totalorder %s27, %s30
      %p36 = scmp.eq.s32.totalorder %s17, 0
      %p37 = por %p35, %p36
      %p38 = scmp.ne.s32.totalorder %s27, %s30
      %p39 = scmp.eq.s32.totalorder %s22, 1
      %p40 = por %p38, %p39
      %p41 = scmp.ne.s32.totalorder %s30, %s31
      %p42 = scmp.eq.s32.totalorder %s22, 0
      %p43 = por %p41, %p42
      %p44 = scmp.ne.s32.totalorder %s30, %s31
      %p45 = scmp.eq.s32.totalorder %s23, 1
      %p46 = por %p44, %p45
      %p48 = scmp.ne.s32.totalorder %s31, %s47
      %p49 = scmp.eq.s32.totalorder %s23, 0
      %p50 = por %p48, %p49
      %s52 = sadd.s32 %s51, 1
      %p55 = scmp.eq.s32.totalorder %s17, 1
      %p56 = scmp.ne.s32.totalorder %s51, %s53
      %p57 = scmp.eq.s32.totalorder %s17, 0
      %p58 = por %p56, %p57
      %p59 = scmp.ne.s32.totalorder %s51, %s53
      %p60 = scmp.eq.s32.totalorder %s22, 1
      %p61 = por %p59, %p60
      %p62 = scmp.ne.s32.totalorder %s53, %s54
      %p63 = scmp.eq.s32.totalorder %s22, 0
      %p64 = por %p62, %p63
      %p65 = scmp.ne.s32.totalorder %s53, %s54
      %p66 = scmp.eq.s32.totalorder %s23, 1
      %p67 = por %p65, %p66
      %p69 = scmp.ne.s32.totalorder %s54, %s68
      %p70 = scmp.eq.s32.totalorder %s23, 0
      %p71 = por %p69, %p70
      %s73 = sadd.s32 %s72, 1
      %p76 = scmp.eq.s32.totalorder %s17, 1
      %p77 = scmp.ne.s32.totalorder %s72, %s74
      %p78 = scmp.eq.s32.totalorder %s17, 0
      %p79 = por %p77, %p78
      %p80 = scmp.ne.s32.totalorder %s72, %s74
      %p81 = scmp.eq.s32.totalorder %s22, 1
      %p82 = por %p80, %p81
      %p83 = scmp.ne.s32.totalorder %s74, %s75
      %p84 = scmp.eq.s32.totalorder %s22, 0
      %p85 = por %p83, %p84
      %p86 = scmp.ne.s32.totalorder %s74, %s75
      %p87 = scmp.eq.s32.totalorder %s23, 1
      %p88 = por %p86, %p87
      %p90 = scmp.ne.s32.totalorder %s75, %s89
      %p91 = scmp.eq.s32.totalorder %s23, 0
      %p92 = por %p90, %p91
      %s94 = sadd.s32 %s93, 1
      %p97 = scmp.eq.s32.totalorder %s17, 1
      %p98 = scmp.ne.s32.totalorder %s93, %s95
      %p99 = scmp.eq.s32.totalorder %s17, 0
      %p100 = por %p98, %p99
      %p101 = scmp.ne.s32.totalorder %s93, %s95
      %p102 = scmp.eq.s32.totalorder %s22, 1
      %p103 = por %p101, %p102
      %p104 = scmp.ne.s32.totalorder %s95, %s96
      %p105 = scmp.eq.s32.totalorder %s22, 0
      %p106 = por %p104, %p105
      %p107 = scmp.ne.s32.totalorder %s95, %s96
      %p108 = scmp.eq.s32.totalorder %s23, 1
      %p109 = por %p107, %p108
      %p111 = scmp.ne.s32.totalorder %s96, %s110
      %p112 = scmp.eq.s32.totalorder %s23, 0
      %p113 = por %p111, %p112
      %s114 = ssub.s32 %s17, %s24
      %p115 = scmp.eq.s32.totalorder %s114, 0
      %s117 = sadd.s32 %s116, 1
      %s118 = scalar_select %p115, %s116, %s117
      %p121 = pneg %p115
      %p122 = scmp.eq.s32.totalorder %s17, 1
      %p123 = por %p121, %p122
      %p124 = scmp.ne.s32.totalorder %s116, %s119
      %p125 = scmp.eq.s32.totalorder %s17, 0
      %p126 = por %p124, %p125
      %p127 = scmp.ne.s32.totalorder %s116, %s119
      %p128 = scmp.eq.s32.totalorder %s22, 1
      %p129 = por %p127, %p128
      %p130 = scmp.ne.s32.totalorder %s119, %s120
      %p131 = scmp.eq.s32.totalorder %s22, 0
      %p132 = por %p130, %p131
      %p133 = scmp.ne.s32.totalorder %s119, %s120
      %p134 = scmp.eq.s32.totalorder %s23, 1
      %p135 = por %p133, %p134
      %p137 = scmp.ne.s32.totalorder %s120, %s136
      %p138 = scmp.eq.s32.totalorder %s23, 0
      %p139 = por %p137, %p138
      %p140 = scmp.le.s32.totalorder 1, %s17
      %p141 = scmp.lt.s32.totalorder %s17, 3
      %p142 = pnand %p140, %p141
      %p143 = pneg %p142
      // Predicated region
      $region9: #{tpu_custom_call.1} parent=5 // pred_check
        _
      $region10: #{tpu_custom_call.1} parent=5 // pred_check_branch
        %145 = sbr.rel (%p142) target = $region12
      $region11: #{tpu_custom_call.1} parent=5 // pred_region
        %s146 = ssub.s32 %s17, 1
        // Predicated region
        $region13: #{tpu_custom_call.1} parent=11 // pred_check
          %p147 = pneg %p64
        $region14: #{tpu_custom_call.1} parent=11 // pred_check_branch
          %149 = sbr.rel (%p147) target = $region16
        $region15: #{tpu_custom_call.1} parent=11 // pred_region
          %s151 = ssub.s32 512, 512
          %152 = vsyncadd [#allocation6], %s151
          %s153 = sshll.u32 [#allocation5], 4
          %s154 = int_to_ptr.vmem [resolvable:$true] %s153
          %159 = dma.hbm_to_vmem [thread:$0]  %s1, 512, %s154, [#allocation6], 128, 128, 8
        $region16: #{tpu_custom_call.1} parent=11 // pred_fallthru
          _
        // Predicated region
        $region17: #{tpu_custom_call.1} parent=11 // pred_check
          %p160 = pneg %p85
        $region18: #{tpu_custom_call.1} parent=11 // pred_check_branch
          %162 = sbr.rel (%p160) target = $region20
        $region19: #{tpu_custom_call.1} parent=11 // pred_region
          _
        $region20: #{tpu_custom_call.1} parent=11 // pred_fallthru
          _
        // Predicated region
        $region21: #{tpu_custom_call.1} parent=11 // pred_check
          %p163 = pneg %p106
        $region22: #{tpu_custom_call.1} parent=11 // pred_check_branch
          %165 = sbr.rel (%p163) target = $region24
        $region23: #{tpu_custom_call.1} parent=11 // pred_region
          _
        $region24: #{tpu_custom_call.1} parent=11 // pred_fallthru
          _
      $region12: #{tpu_custom_call.1} parent=5 // pred_fallthru
        _
      %p166 = scmp.lt.s32.totalorder %s17, 2
      // Predicated region
      $region25: #{tpu_custom_call.1} parent=5 // pred_check
        %p167 = pneg %p166
      $region26: #{tpu_custom_call.1} parent=5 // pred_check_branch
        %169 = sbr.rel (%p167) target = $region28
      $region27: #{tpu_custom_call.1} parent=5 // pred_region
        // Predicated region
        $region29: #{tpu_custom_call.1} parent=27 // pred_check
          %p170 = pneg %p37
        $region30: #{tpu_custom_call.1} parent=27 // pred_check_branch
          %172 = sbr.rel (%p170) target = $region32
        $region31: #{tpu_custom_call.1} parent=27 // pred_region
          %s173 = sand.u32 %s27, 1
          %s174 = scalar_lea.sflag [#allocation3], %s173
          %s175 = sand.u32 %s27, 1
          %s176 = smul.addr %s175, 8
          %s177 = scalar_lea.vmem [#allocation2], %s176
          %s179 = ssub.s32 128, 128
          %180 = vsyncadd %s174, %s179
          %s181 = smul.addr %s17, 128
          %s182 = scalar_lea.hbm %s0, %s181
          %s184 = sshll.u32 %s177, 4
          %s185 = int_to_ptr.vmem [resolvable:$true] %s184
          %187 = dma.hbm_to_vmem [thread:$0]  %s182, 128, %s185, %s174
        $region32: #{tpu_custom_call.1} parent=27 // pred_fallthru
          _
      $region28: #{tpu_custom_call.1} parent=5 // pred_fallthru
        _
      %p188 = scmp.le.s32.totalorder 1, %s17
      %p189 = scmp.lt.s32.totalorder %s17, 3
      %p190 = pnand %p188, %p189
      %p191 = pneg %p190
      // Predicated region
      $region33: #{tpu_custom_call.1} parent=5 // pred_check
        _
      $region34: #{tpu_custom_call.1} parent=5 // pred_check_branch
        %193 = sbr.rel (%p190) target = $region36
      $region35: #{tpu_custom_call.1} parent=5 // pred_region
        %s194 = ssub.s32 %s17, 1
        %s195 = sand.u32 %s30, 1
        %s196 = scalar_lea.sflag [#allocation3], %s195
        %s197 = sand.u32 %s30, 1
        %s198 = smul.addr %s197, 8
        %s199 = scalar_lea.vmem [#allocation2], %s198
        // Predicated region
        $region37: #{tpu_custom_call.1} parent=35 // pred_check
          %p200 = pneg %p43
        $region38: #{tpu_custom_call.1} parent=35 // pred_check_branch
          %202 = sbr.rel (%p200) target = $region40
        $region39: #{tpu_custom_call.1} parent=35 // pred_region
          %203 = dma.done %s196, 128
        $region40: #{tpu_custom_call.1} parent=35 // pred_fallthru
          _
        // Predicated region
        $region41: #{tpu_custom_call.1} parent=35 // pred_check
          %p204 = pneg %p64
        $region42: #{tpu_custom_call.1} parent=35 // pred_check_branch
          %206 = sbr.rel (%p204) target = $region44
        $region43: #{tpu_custom_call.1} parent=35 // pred_region
          %207 = dma.done [#allocation6], 512
        $region44: #{tpu_custom_call.1} parent=35 // pred_fallthru
          _
        %s208 = sand.u32 %s30, 1
        %s209 = scalar_lea.sflag [#allocation3], %s208
        %s210 = sand.u32 %s30, 1
        %s211 = smul.addr %s210, 8
        %s212 = scalar_lea.vmem [#allocation2], %s211
        %p213 = pneg %p43
        %p214 = pneg %p40
        %p215 = pneg %p64
        %p216 = pneg %p61
        %p217 = pneg %p85
        %p218 = pneg %p82
        %p219 = pneg %p106
        %p220 = pneg %p103
        %p221 = pneg %p132
        %p222 = pneg %p129
        %s223 = sand.u32 %s119, 1
        %s224 = scalar_lea.sflag [#allocation4], %s223
        %s225 = sand.u32 %s119, 1
        %s226 = smul.addr %s225, 8
        %s227 = scalar_lea.vmem [#allocation7], %s226
        %v228 = vld [vmem:[%s199] sm:$0xff]
        %v229 = vld [vmem:[#allocation5] sm:$0xff]
        %v230 = vld [vmem:[#allocation5 + $0x8] sm:$0xff]
        %v231 = vld [vmem:[#allocation5 + $0x10] sm:$0xff]
        %v232 = vld [vmem:[#allocation5 + $0x18] sm:$0xff]
        %v233 = vld [vmem:[%s2] sm:$0x1]
        %v235 = vlaneseq
        %v236 = vshrl.u32 %v235, 7
        %v237 = vsub.s32 0, %v236
        %v238 = vrot.slane %v233, %v237
        %vm240 = vcmask 261120
        %v242 = vsel %vm240, %v228, 0
        %244 = vmatprep.subr.mxu0 0.0
        %245 = vmatpush1.msra.mxu0 %v229
        %246 = vmatprep.subr.mxu0 0.0
        %247 = vmatpush1.msra.mxu0 %v230
        %248 = vmatprep.subr.mxu0 0.0
        %249 = vmatpush1.msra.mxu0 %v231
        %250 = vmatprep.subr.mxu0 0.0
        %251 = vmatpush1.msra.mxu0 %v232
        %252 = vmatprep.subr.mxu0 0.0
        %253 = vmatpush1.msra.mxu0 0.0
        %254 = vmatprep.subr.mxu0 0.0
        %255 = vmatpush1.msra.mxu0 0.0
        %256 = vmatprep.subr.mxu0 0.0
        %257 = vmatpush1.msra.mxu0 0.0
        %258 = vmatprep.subr.mxu0 0.0
        %259 = vmatpush1.msra.mxu0 0.0
        %260 = vmatprep.subr.mxu0 0.0
        %261 = vmatpush1.msra.mxu0 0.0
        %262 = vmatprep.subr.mxu0 0.0
        %263 = vmatpush1.msra.mxu0 0.0
        %264 = vmatprep.subr.mxu0 0.0
        %265 = vmatpush1.msra.mxu0 0.0
        %266 = vmatprep.subr.mxu0 0.0
        %267 = vmatpush1.msra.mxu0 0.0
        %268 = vmatprep.subr.mxu0 0.0
        %269 = vmatpush1.msra.mxu0 0.0
        %270 = vmatprep.subr.mxu0 0.0
        %271 = vmatpush1.msra.mxu0 0.0
        %272 = vmatprep.subr.mxu0 0.0
        %273 = vmatpush1.msra.mxu0 0.0
        %274 = vmatprep.subr.mxu0 0.0
        %275 = vmatpush1.msra.mxu0 0.0
        %276 = vmatprep.subr.mxu0 0.0
        %277 = vmatpush1.msra.mxu0 0.0
        %278 = vmatprep.subr.mxu0 0.0
        %279 = vmatpush1.msra.mxu0 0.0
        %280 = vmatprep.subr.mxu0 0.0
        %281 = vmatpush1.msra.mxu0 0.0
        %282 = vmatprep.subr.mxu0 0.0
        %283 = vmatpush1.msra.mxu0 0.0
        %284 = vmatprep.subr.mxu0 0.0
        %285 = vmatpush1.msra.mxu0 0.0
        %286 = vmatprep.subr.mxu0 0.0
        %287 = vmatpush1.msra.mxu0 0.0
        %288 = vmatprep.subr.mxu0 0.0
        %289 = vmatpush1.msra.mxu0 0.0
        %290 = vmatprep.subr.mxu0 0.0
        %291 = vmatpush1.msra.mxu0 0.0
        %292 = vmatprep.subr.mxu0 0.0
        %293 = vmatpush1.msra.mxu0 0.0
        %294 = vmatprep.subr.mxu0 0.0
        %295 = vmatpush1.msra.mxu0 0.0
        %296 = vmatprep.subr.mxu0 0.0
        %297 = vmatpush1.msra.mxu0 0.0
        %298 = vmatprep.subr.mxu0 0.0
        %299 = vmatpush1.msra.mxu0 0.0
        %300 = vmatprep.subr.mxu0 0.0
        %301 = vmatpush1.msra.mxu0 0.0
        %302 = vmatprep.subr.mxu0 0.0
        %303 = vmatpush1.msra.mxu0 0.0
        %304 = vmatprep.subr.mxu0 0.0
        %305 = vmatpush1.msra.mxu0 0.0
        %306 = vmatprep.subr.mxu0 0.0
        %307 = vmatpush1.msra.mxu0 0.0
        %308 = vmatprep.mubr.f32.mxu0 0.0
        %309 = vmatmul.mubr.f32.gmra.mrb[0].mxu0 %v242
        %v310 = vpop.f32.mrb[0].mxu0
        %v311 = vadd.f32 %v238, %v310
        %v312 = vpop.f32.mrb[0].mxu0
        %313 = vdwg.mxu0
        %v314 = vmul.f32 %v311, 0.5
        %v315 = vmul.f32 %v311, 0.70710677
        %v316 = vand.u32 2147483647, %v315
        %v317 = vmul.f32 %v316, 0.3275911
        %v318 = vadd.f32 %v317, 1.0
        %v319 = vrcp.pop %v318
        %v320 = vmul.f32 1.0, %v319
        %v321 = vmul.f32 %v320, 1.0614054
        %v322 = vadd.f32 %v321, -1.4531521
        %v323 = vmul.f32 %v322, %v320
        %v324 = vadd.f32 %v323, 1.4214138
        %v325 = vmul.f32 %v324, %v320
        %v326 = vadd.f32 %v325, -0.28449672
        %v327 = vmul.f32 %v326, %v320
        %v328 = vadd.f32 %v327, 0.2548296
        %v329 = vmul.f32 %v328, %v320
        %v330 = vmul.f32 %v316, %v316
        %v331 = vsub.f32 0.0, %v330
        %v332 = vmul.f32 %v331, 1.442695
        %v333 = vpow.pop %v332
        %v334 = vmul.f32 %v329, %v333
        %v335 = vsub.f32 1.0, %v334
        %vm336 = vcmp.ge.f32.partialorder %v315, 0.0
        %v337 = vsub.f32 0.0, %v335
        %v338 = vsel %vm336, %v335, %v337
        %v339 = vadd.f32 %v338, 1.0
        %v340 = vmul.f32 %v314, %v339
        %v341 = vmul.f32 %v340, %v340
        %v342 = vsel %vm240, %v341, 0.0
        %343 = vadd.xlane.f32.xlu0 %v342
        %v344 = vpop.xlane.xlu0 %343
        %v345 = vrcp.pop 32.0
        %v346 = vmul.f32 %v344, %v345
        %v347 = vadd.f32 %v346, 1e-06
        %v348 = vrsqrt.pop %v347
        %v349 = vmul.f32 %v340, %v348
        %v350 = vld [vmem:[%s3] sm:$0x1]
        %v352 = vlaneseq
        %v353 = vshrl.u32 %v352, 7
        %v354 = vsub.s32 0, %v353
        %v355 = vrot.slane %v350, %v354
        %v357 = vmul.f32 %v355, %v349
        %358 = vst.msk [vmem:[%s227] sm:$0xff] %vm240, %v357
        %s359 = sand.u32 %s119, 1
        %s360 = scalar_lea.sflag [#allocation4], %s359
        %s361 = sand.u32 %s119, 1
        %s362 = smul.addr %s361, 8
        %s363 = scalar_lea.vmem [#allocation7], %s362
        // Predicated region
        $region45: #{tpu_custom_call.1} parent=35 // pred_check
          %p364 = pneg %p129
        $region46: #{tpu_custom_call.1} parent=35 // pred_check_branch
          %366 = sbr.rel (%p364) target = $region48
        $region47: #{tpu_custom_call.1} parent=35 // pred_region
          %s368 = ssub.s32 128, 128
          %369 = vsyncadd %s360, %s368
          %s370 = smul.addr %s22, 128
          %s371 = scalar_lea.hbm %s4, %s370
          %s373 = sshll.u32 %s363, 4
          %s374 = int_to_ptr.vmem [resolvable:$true] %s373
          %376 = dma.vmem_to_hbm [thread:$0]  %s374, 128, %s371, %s360
        $region48: #{tpu_custom_call.1} parent=35 // pred_fallthru
          _
      $region36: #{tpu_custom_call.1} parent=5 // pred_fallthru
        _
      %p377 = scmp.le.s32.totalorder 2, %s17
      // Predicated region
      $region49: #{tpu_custom_call.1} parent=5 // pred_check
        %p378 = pneg %p377
      $region50: #{tpu_custom_call.1} parent=5 // pred_check_branch
        %380 = sbr.rel (%p378) target = $region52
      $region51: #{tpu_custom_call.1} parent=5 // pred_region
        %s381 = ssub.s32 %s17, 2
        // Predicated region
        $region53: #{tpu_custom_call.1} parent=51 // pred_check
          %p382 = pneg %p135
        $region54: #{tpu_custom_call.1} parent=51 // pred_check_branch
          %384 = sbr.rel (%p382) target = $region56
        $region55: #{tpu_custom_call.1} parent=51 // pred_region
          %s385 = sand.u32 %s120, 1
          %s386 = scalar_lea.sflag [#allocation4], %s385
          %s387 = sand.u32 %s120, 1
          %s388 = smul.addr %s387, 8
          %s389 = scalar_lea.vmem [#allocation7], %s388
          %390 = dma.done %s386, 128
        $region56: #{tpu_custom_call.1} parent=51 // pred_fallthru
          _
      $region52: #{tpu_custom_call.1} parent=5 // pred_fallthru
        _
    $region6: #{tpu_custom_call.1} parent=1 // loop_footer
      %s21 = sadd.s32 1, %s17
    $region7: #{tpu_custom_call.1} parent=1 // loop_footer_branch
      %16 = sbr.rel target = $region3
    $region8: #{tpu_custom_call.1} parent=1 // loop_exit
      _
    %391 = vsyncpa [#allocation3], 1
    %s392 = scalar_lea.sflag [#allocation3], 1
    %393 = vsyncpa %s392, 1
    %394 = vsyncpa [#allocation6], 1
    %395 = vsyncpa [#allocation4], 1
    %s396 = scalar_lea.sflag [#allocation4], 1
    %397 = vsyncpa %s396, 1

// kernel: tpu_custom_call.1
$region0: #{tpu_custom_call.1}
  #allocation0 [shape = 'u32[]', space=smem, size = 0x4, offset = 0x4, fixed_abs, tag = 'smem constant byte address 0x4 - core index']
  #allocation1 [shape = 'u32[144,128]{1,0:T(1,128)}', space=vmem, size = 0x12000, scoped, tag = 'internal scratch']
  %s0 = inlined_call_operand.hbm [shape: f32[16,32], index: 0, kind: input, shape index: {}]
  %s1 = inlined_call_operand.hbm [shape: f32[32,32], index: 1, kind: input, shape index: {}]
  %s2 = inlined_call_operand.vmem [shape: f32[1,32], index: 2, kind: input, shape index: {}]
  %s3 = inlined_call_operand.vmem [shape: f32[1,32], index: 3, kind: input, shape index: {}]
  %s4 = inlined_call_operand.hbm [shape: f32[16,32], index: 4, kind: output, shape index: {}]
  %s5 = sld [smem:[#allocation0]]
  $region57: #{tpu_custom_call.1} parent=0
    _
  %s7 = ssub.s32 1, %s5
  %s8 = scalar_select 0, %s7, %s5
  $region1: #{tpu_custom_call.1} parent=0
    #allocation2 [shape = 'u8[8192]{0}', space=vmem, size = 0x2000, scoped, tag = 'input window, operand 0']
    #allocation3 [shape = 's32[2]{0}', space=sflag, size = 0x8, scoped, tag = 'scoped memory for tpu_custom_call.1']
    #allocation4 [shape = 's32[2]{0}', space=sflag, size = 0x8, scoped, tag = 'scoped memory for tpu_custom_call.1']
    #allocation5 [shape = 'u8[16384]{0}', space=vmem, size = 0x4000, scoped, tag = 'input window, operand 1, single buffered']
    #allocation6 [shape = 's32[1]{0}', space=sflag, size = 0x4, scoped, tag = 'scoped memory for tpu_custom_call.1']
    #allocation7 [shape = 'u8[8192]{0}', space=vmem, size = 0x2000, scoped, tag = 'output window, operand 0']
    %9 = vsyncpa [#allocation3], 0
    %s10 = scalar_lea.sflag [#allocation3], 1
    %11 = vsyncpa %s10, 0
    %12 = vsyncpa [#allocation6], 0
    %13 = vsyncpa [#allocation4], 0
    %s14 = scalar_lea.sflag [#allocation4], 1
    %15 = vsyncpa %s14, 0
    loop: start=0, step=1, limit=4
    $region2: #{tpu_custom_call.1} parent=1 // loop_pre_header
      _
    $region3: #{tpu_custom_call.1} parent=1 // loop_header
      %s17 = sphi 0, %s21
      %p18 = scmp.ge.s32.totalorder %s17, 4
      %s27 = sphi 0, %s29
      %s30 = sphi 0, %s27
      %s31 = sphi 0, %s30
      %s47 = sphi 0, %s31
      %s51 = sphi 0, %s51
      %s53 = sphi 0, %s51
      %s54 = sphi 0, %s53
      %s68 = sphi 0, %s54
      %s72 = sphi 0, %s72
      %s74 = sphi 0, %s72
      %s75 = sphi 0, %s74
      %s89 = sphi 0, %s75
      %s93 = sphi 0, %s93
      %s95 = sphi 0, %s93
      %s96 = sphi 0, %s95
      %s110 = sphi 0, %s96
      %s116 = sphi 0, %s118
      %s119 = sphi 0, %s116
      %s120 = sphi 0, %s119
      %s136 = sphi 0, %s120
    $region4: #{tpu_custom_call.1} parent=1 // loop_header_branch
      %20 = sbr.rel (%p18) target = $region8
    $region5: #{tpu_custom_call.1} parent=1 // loop_body
      %s22 = ssub.s32 %s17, 1
      %s23 = ssub.s32 %s17, 2
      %s24 = sadd.s32 %s17, 1
      %s25 = ssub.s32 %s17, %s24
      %p26 = scmp.eq.s32.totalorder %s25, 0
      %s28 = sadd.s32 %s27, 1
      %s29 = scalar_select %p26, %s27, %s28
      %p32 = pneg %p26
      %p33 = scmp.eq.s32.totalorder %s17, 1
      %p34 = por %p32, %p33
      %p35 = scmp.ne.s32.totalorder %s27, %s30
      %p36 = scmp.eq.s32.totalorder %s17, 0
      %p37 = por %p35, %p36
      %p38 = scmp.ne.s32.totalorder %s27, %s30
      %p39 = scmp.eq.s32.totalorder %s22, 1
      %p40 = por %p38, %p39
      %p41 = scmp.ne.s32.totalorder %s30, %s31
      %p42 = scmp.eq.s32.totalorder %s22, 0
      %p43 = por %p41, %p42
      %p44 = scmp.ne.s32.totalorder %s30, %s31
      %p45 = scmp.eq.s32.totalorder %s23, 1
      %p46 = por %p44, %p45
      %p48 = scmp.ne.s32.totalorder %s31, %s47
      %p49 = scmp.eq.s32.totalorder %s23, 0
      %p50 = por %p48, %p49
      %s52 = sadd.s32 %s51, 1
      %p55 = scmp.eq.s32.totalorder %s17, 1
      %p56 = scmp.ne.s32.totalorder %s51, %s53
      %p57 = scmp.eq.s32.totalorder %s17, 0
      %p58 = por %p56, %p57
      %p59 = scmp.ne.s32.totalorder %s51, %s53
      %p60 = scmp.eq.s32.totalorder %s22, 1
      %p61 = por %p59, %p60
      %p62 = scmp.ne.s32.totalorder %s53, %s54
      %p63 = scmp.eq.s32.totalorder %s22, 0
      %p64 = por %p62, %p63
      %p65 = scmp.ne.s32.totalorder %s53, %s54
      %p66 = scmp.eq.s32.totalorder %s23, 1
      %p67 = por %p65, %p66
      %p69 = scmp.ne.s32.totalorder %s54, %s68
      %p70 = scmp.eq.s32.totalorder %s23, 0
      %p71 = por %p69, %p70
      %s73 = sadd.s32 %s72, 1
      %p76 = scmp.eq.s32.totalorder %s17, 1
      %p77 = scmp.ne.s32.totalorder %s72, %s74
      %p78 = scmp.eq.s32.totalorder %s17, 0
      %p79 = por %p77, %p78
      %p80 = scmp.ne.s32.totalorder %s72, %s74
      %p81 = scmp.eq.s32.totalorder %s22, 1
      %p82 = por %p80, %p81
      %p83 = scmp.ne.s32.totalorder %s74, %s75
      %p84 = scmp.eq.s32.totalorder %s22, 0
      %p85 = por %p83, %p84
      %p86 = scmp.ne.s32.totalorder %s74, %s75
      %p87 = scmp.eq.s32.totalorder %s23, 1
      %p88 = por %p86, %p87
      %p90 = scmp.ne.s32.totalorder %s75, %s89
      %p91 = scmp.eq.s32.totalorder %s23, 0
      %p92 = por %p90, %p91
      %s94 = sadd.s32 %s93, 1
      %p97 = scmp.eq.s32.totalorder %s17, 1
      %p98 = scmp.ne.s32.totalorder %s93, %s95
      %p99 = scmp.eq.s32.totalorder %s17, 0
      %p100 = por %p98, %p99
      %p101 = scmp.ne.s32.totalorder %s93, %s95
      %p102 = scmp.eq.s32.totalorder %s22, 1
      %p103 = por %p101, %p102
      %p104 = scmp.ne.s32.totalorder %s95, %s96
      %p105 = scmp.eq.s32.totalorder %s22, 0
      %p106 = por %p104, %p105
      %p107 = scmp.ne.s32.totalorder %s95, %s96
      %p108 = scmp.eq.s32.totalorder %s23, 1
      %p109 = por %p107, %p108
      %p111 = scmp.ne.s32.totalorder %s96, %s110
      %p112 = scmp.eq.s32.totalorder %s23, 0
      %p113 = por %p111, %p112
      %s114 = ssub.s32 %s17, %s24
      %p115 = scmp.eq.s32.totalorder %s114, 0
      %s117 = sadd.s32 %s116, 1
      %s118 = scalar_select %p115, %s116, %s117
      %p121 = pneg %p115
      %p122 = scmp.eq.s32.totalorder %s17, 1
      %p123 = por %p121, %p122
      %p124 = scmp.ne.s32.totalorder %s116, %s119
      %p125 = scmp.eq.s32.totalorder %s17, 0
      %p126 = por %p124, %p125
      %p127 = scmp.ne.s32.totalorder %s116, %s119
      %p128 = scmp.eq.s32.totalorder %s22, 1
      %p129 = por %p127, %p128
      %p130 = scmp.ne.s32.totalorder %s119, %s120
      %p131 = scmp.eq.s32.totalorder %s22, 0
      %p132 = por %p130, %p131
      %p133 = scmp.ne.s32.totalorder %s119, %s120
      %p134 = scmp.eq.s32.totalorder %s23, 1
      %p135 = por %p133, %p134
      %p137 = scmp.ne.s32.totalorder %s120, %s136
      %p138 = scmp.eq.s32.totalorder %s23, 0
      %p139 = por %p137, %p138
      %p140 = scmp.le.s32.totalorder 1, %s17
      %p141 = scmp.lt.s32.totalorder %s17, 3
      %p142 = pnand %p140, %p141
      %p143 = pneg %p142
      // Predicated region
      $region9: #{tpu_custom_call.1} parent=5 // pred_check
        _
      $region10: #{tpu_custom_call.1} parent=5 // pred_check_branch
        %145 = sbr.rel (%p142) target = $region12
      $region11: #{tpu_custom_call.1} parent=5 // pred_region
        %s146 = ssub.s32 %s17, 1
        // Predicated region
        $region13: #{tpu_custom_call.1} parent=11 // pred_check
          %p147 = pneg %p64
        $region14: #{tpu_custom_call.1} parent=11 // pred_check_branch
          %149 = sbr.rel (%p147) target = $region16
        $region15: #{tpu_custom_call.1} parent=11 // pred_region
          %s151 = ssub.s32 512, 512
          %152 = vsyncadd [#allocation6], %s151
          %s153 = sshll.u32 [#allocation5], 4
          %s154 = int_to_ptr.vmem [resolvable:$true] %s153
          %159 = dma.hbm_to_vmem [thread:$0]  %s1, 512, %s154, [#allocation6], 128, 128, 8
        $region16: #{tpu_custom_call.1} parent=11 // pred_fallthru
          _
        // Predicated region
        $region17: #{tpu_custom_call.1} parent=11 // pred_check
          %p160 = pneg %p85
        $region18: #{tpu_custom_call.1} parent=11 // pred_check_branch
          %162 = sbr.rel (%p160) target = $region20
        $region19: #{tpu_custom_call.1} parent=11 // pred_region
          _
        $region20: #{tpu_custom_call.1} parent=11 // pred_fallthru
          _
        // Predicated region
        $region21: #{tpu_custom_call.1} parent=11 // pred_check
          %p163 = pneg %p106
        $region22: #{tpu_custom_call.1} parent=11 // pred_check_branch
          %165 = sbr.rel (%p163) target = $region24
        $region23: #{tpu_custom_call.1} parent=11 // pred_region
          _
        $region24: #{tpu_custom_call.1} parent=11 // pred_fallthru
          _
      $region12: #{tpu_custom_call.1} parent=5 // pred_fallthru
        _
      %p166 = scmp.lt.s32.totalorder %s17, 2
      // Predicated region
      $region25: #{tpu_custom_call.1} parent=5 // pred_check
        %p167 = pneg %p166
      $region26: #{tpu_custom_call.1} parent=5 // pred_check_branch
        %169 = sbr.rel (%p167) target = $region28
      $region27: #{tpu_custom_call.1} parent=5 // pred_region
        // Predicated region
        $region29: #{tpu_custom_call.1} parent=27 // pred_check
          %p170 = pneg %p37
        $region30: #{tpu_custom_call.1} parent=27 // pred_check_branch
          %172 = sbr.rel (%p170) target = $region32
        $region31: #{tpu_custom_call.1} parent=27 // pred_region
          %s173 = sand.u32 %s27, 1
          %s174 = scalar_lea.sflag [#allocation3], %s173
          %s175 = sand.u32 %s27, 1
          %s176 = smul.addr %s175, 8
          %s177 = scalar_lea.vmem [#allocation2], %s176
          %s179 = ssub.s32 128, 128
          %180 = vsyncadd %s174, %s179
          %s181 = smul.addr %s17, 128
          %s182 = scalar_lea.hbm %s0, %s181
          %s184 = sshll.u32 %s177, 4
          %s185 = int_to_ptr.vmem [resolvable:$true] %s184
          %187 = dma.hbm_to_vmem [thread:$0]  %s182, 128, %s185, %s174
        $region32: #{tpu_custom_call.1} parent=27 // pred_fallthru
          _
      $region28: #{tpu_custom_call.1} parent=5 // pred_fallthru
        _
      %p188 = scmp.le.s32.totalorder 1, %s17
      %p189 = scmp.lt.s32.totalorder %s17, 3
      %p190 = pnand %p188, %p189
      %p191 = pneg %p190
      // Predicated region
      $region33: #{tpu_custom_call.1} parent=5 // pred_check
        _
      $region34: #{tpu_custom_call.1} parent=5 // pred_check_branch
        %193 = sbr.rel (%p190) target = $region36
      $region35: #{tpu_custom_call.1} parent=5 // pred_region
        %s194 = ssub.s32 %s17, 1
        %s195 = sand.u32 %s30, 1
        %s196 = scalar_lea.sflag [#allocation3], %s195
        %s197 = sand.u32 %s30, 1
        %s198 = smul.addr %s197, 8
        %s199 = scalar_lea.vmem [#allocation2], %s198
        // Predicated region
        $region37: #{tpu_custom_call.1} parent=35 // pred_check
          %p200 = pneg %p43
        $region38: #{tpu_custom_call.1} parent=35 // pred_check_branch
          %202 = sbr.rel (%p200) target = $region40
        $region39: #{tpu_custom_call.1} parent=35 // pred_region
          %203 = dma.done %s196, 128
        $region40: #{tpu_custom_call.1} parent=35 // pred_fallthru
          _
        // Predicated region
        $region41: #{tpu_custom_call.1} parent=35 // pred_check
          %p204 = pneg %p64
        $region42: #{tpu_custom_call.1} parent=35 // pred_check_branch
          %206 = sbr.rel (%p204) target = $region44
        $region43: #{tpu_custom_call.1} parent=35 // pred_region
          %207 = dma.done [#allocation6], 512
        $region44: #{tpu_custom_call.1} parent=35 // pred_fallthru
          _
        %s208 = sand.u32 %s30, 1
        %s209 = scalar_lea.sflag [#allocation3], %s208
        %s210 = sand.u32 %s30, 1
        %s211 = smul.addr %s210, 8
        %s212 = scalar_lea.vmem [#allocation2], %s211
        %p213 = pneg %p43
        %p214 = pneg %p40
        %p215 = pneg %p64
        %p216 = pneg %p61
        %p217 = pneg %p85
        %p218 = pneg %p82
        %p219 = pneg %p106
        %p220 = pneg %p103
        %p221 = pneg %p132
        %p222 = pneg %p129
        %s223 = sand.u32 %s119, 1
        %s224 = scalar_lea.sflag [#allocation4], %s223
        %s225 = sand.u32 %s119, 1
        %s226 = smul.addr %s225, 8
        %s227 = scalar_lea.vmem [#allocation7], %s226
        %v228 = vld [vmem:[%s199] sm:$0xff]
        %v229 = vld [vmem:[#allocation5] sm:$0xff]
        %v230 = vld [vmem:[#allocation5 + $0x8] sm:$0xff]
        %v231 = vld [vmem:[#allocation5 + $0x10] sm:$0xff]
        %v232 = vld [vmem:[#allocation5 + $0x18] sm:$0xff]
        %v233 = vld [vmem:[%s2] sm:$0x1]
        %v235 = vlaneseq
        %v236 = vshrl.u32 %v235, 7
        %v237 = vsub.s32 0, %v236
        %v238 = vrot.slane %v233, %v237
        %vm240 = vcmask 261120
        %v242 = vsel %vm240, %v228, 0
        %244 = vmatprep.subr.mxu0 0.0
        %245 = vmatpush1.msra.mxu0 %v229
        %246 = vmatprep.subr.mxu0 0.0
        %247 = vmatpush1.msra.mxu0 %v230
        %248 = vmatprep.subr.mxu0 0.0
        %249 = vmatpush1.msra.mxu0 %v231
        %250 = vmatprep.subr.mxu0 0.0
        %251 = vmatpush1.msra.mxu0 %v232
        %252 = vmatprep.subr.mxu0 0.0
        %253 = vmatpush1.msra.mxu0 0.0
        %254 = vmatprep.subr.mxu0 0.0
        %255 = vmatpush1.msra.mxu0 0.0
        %256 = vmatprep.subr.mxu0 0.0
        %257 = vmatpush1.msra.mxu0 0.0
        %258 = vmatprep.subr.mxu0 0.0
        %259 = vmatpush1.msra.mxu0 0.0
        %260 = vmatprep.subr.mxu0 0.0
        %261 = vmatpush1.msra.mxu0 0.0
        %262 = vmatprep.subr.mxu0 0.0
        %263 = vmatpush1.msra.mxu0 0.0
        %264 = vmatprep.subr.mxu0 0.0
        %265 = vmatpush1.msra.mxu0 0.0
        %266 = vmatprep.subr.mxu0 0.0
        %267 = vmatpush1.msra.mxu0 0.0
        %268 = vmatprep.subr.mxu0 0.0
        %269 = vmatpush1.msra.mxu0 0.0
        %270 = vmatprep.subr.mxu0 0.0
        %271 = vmatpush1.msra.mxu0 0.0
        %272 = vmatprep.subr.mxu0 0.0
        %273 = vmatpush1.msra.mxu0 0.0
        %274 = vmatprep.subr.mxu0 0.0
        %275 = vmatpush1.msra.mxu0 0.0
        %276 = vmatprep.subr.mxu0 0.0
        %277 = vmatpush1.msra.mxu0 0.0
        %278 = vmatprep.subr.mxu0 0.0
        %279 = vmatpush1.msra.mxu0 0.0
        %280 = vmatprep.subr.mxu0 0.0
        %281 = vmatpush1.msra.mxu0 0.0
        %282 = vmatprep.subr.mxu0 0.0
        %283 = vmatpush1.msra.mxu0 0.0
        %284 = vmatprep.subr.mxu0 0.0
        %285 = vmatpush1.msra.mxu0 0.0
        %286 = vmatprep.subr.mxu0 0.0
        %287 = vmatpush1.msra.mxu0 0.0
        %288 = vmatprep.subr.mxu0 0.0
        %289 = vmatpush1.msra.mxu0 0.0
        %290 = vmatprep.subr.mxu0 0.0
        %291 = vmatpush1.msra.mxu0 0.0
        %292 = vmatprep.subr.mxu0 0.0
        %293 = vmatpush1.msra.mxu0 0.0
        %294 = vmatprep.subr.mxu0 0.0
        %295 = vmatpush1.msra.mxu0 0.0
        %296 = vmatprep.subr.mxu0 0.0
        %297 = vmatpush1.msra.mxu0 0.0
        %298 = vmatprep.subr.mxu0 0.0
        %299 = vmatpush1.msra.mxu0 0.0
        %300 = vmatprep.subr.mxu0 0.0
        %301 = vmatpush1.msra.mxu0 0.0
        %302 = vmatprep.subr.mxu0 0.0
        %303 = vmatpush1.msra.mxu0 0.0
        %304 = vmatprep.subr.mxu0 0.0
        %305 = vmatpush1.msra.mxu0 0.0
        %306 = vmatprep.subr.mxu0 0.0
        %307 = vmatpush1.msra.mxu0 0.0
        %308 = vmatprep.mubr.f32.mxu0 0.0
        %309 = vmatmul.mubr.f32.gmra.mrb[0].mxu0 %v242
        %v310 = vpop.f32.mrb[0].mxu0
        %v311 = vadd.f32 %v238, %v310
        %v312 = vpop.f32.mrb[0].mxu0
        %313 = vdwg.mxu0
        %v314 = vmul.f32 %v311, 0.5
        %v315 = vmul.f32 %v311, 0.70710677
        %v316 = vand.u32 2147483647, %v315
        %v317 = vmul.f32 %v316, 0.3275911
        %v318 = vadd.f32 %v317, 1.0
        %v319 = vrcp.pop %v318
        %v320 = vmul.f32 1.0, %v319
        %v321 = vmul.f32 %v320, 1.0614054
        %v322 = vadd.f32 %v321, -1.4531521
        %v323 = vmul.f32 %v322, %v320
        %v324 = vadd.f32 %v323, 1.4214138
        %v325 = vmul.f32 %v324, %v320
        %v326 = vadd.f32 %v325, -0.28449672
        %v327 = vmul.f32 %v326, %v320
        %v328 = vadd.f32 %v327, 0.2548296
        %v329 = vmul.f32 %v328, %v320
        %v330 = vmul.f32 %v316, %v316
        %v331 = vsub.f32 0.0, %v330
        %v332 = vmul.f32 %v331, 1.442695
        %v333 = vpow.pop %v332
        %v334 = vmul.f32 %v329, %v333
        %v335 = vsub.f32 1.0, %v334
        %vm336 = vcmp.ge.f32.partialorder %v315, 0.0
        %v337 = vsub.f32 0.0, %v335
        %v338 = vsel %vm336, %v335, %v337
        %v339 = vadd.f32 %v338, 1.0
        %v340 = vmul.f32 %v314, %v339
        %v341 = vmul.f32 %v340, %v340
        %v342 = vsel %vm240, %v341, 0.0
        %343 = vadd.xlane.f32.xlu0 %v342
        %v344 = vpop.xlane.xlu0 %343
        %v345 = vrcp.pop 32.0
        %v346 = vmul.f32 %v344, %v345
        %v347 = vadd.f32 %v346, 1e-06
        %v348 = vrsqrt.pop %v347
        %v349 = vmul.f32 %v340, %v348
        %v350 = vld [vmem:[%s3] sm:$0x1]
        %v352 = vlaneseq
        %v353 = vshrl.u32 %v352, 7
        %v354 = vsub.s32 0, %v353
        %v355 = vrot.slane %v350, %v354
        %v357 = vmul.f32 %v355, %v349
        %358 = vst.msk [vmem:[%s227] sm:$0xff] %vm240, %v357
        %s359 = sand.u32 %s119, 1
        %s360 = scalar_lea.sflag [#allocation4], %s359
        %s361 = sand.u32 %s119, 1
        %s362 = smul.addr %s361, 8
        %s363 = scalar_lea.vmem [#allocation7], %s362
        // Predicated region
        $region45: #{tpu_custom_call.1} parent=35 // pred_check
          %p364 = pneg %p129
        $region46: #{tpu_custom_call.1} parent=35 // pred_check_branch
          %366 = sbr.rel (%p364) target = $region48
        $region47: #{tpu_custom_call.1} parent=35 // pred_region
          %s368 = ssub.s32 128, 128
          %369 = vsyncadd %s360, %s368
          %s370 = smul.addr %s22, 128
          %s371 = scalar_lea.hbm %s4, %s370
          %s373 = sshll.u32 %s363, 4
          %s374 = int_to_ptr.vmem [resolvable:$true] %s373
          %376 = dma.vmem_to_hbm [thread:$0]  %s374, 128, %s371, %s360
        $region48: #{tpu_custom_call.1} parent=35 // pred_fallthru
          _
      $region36: #{tpu_custom_call.1} parent=5 // pred_fallthru
        _
      %p377 = scmp.le.s32.totalorder 2, %s17
      // Predicated region
      $region49: #{tpu_custom_call.1} parent=5 // pred_check
        %p378 = pneg %p377
      $region50: #{tpu_custom_call.1} parent=5 // pred_check_branch
        %380 = sbr.rel (%p378) target = $region52
      $region51: #{tpu_custom_call.1} parent=5 // pred_region
        %s381 = ssub.s32 %s17, 2
        // Predicated region
        $region53: #{tpu_custom_call.1} parent=51 // pred_check
          %p382 = pneg %p135
        $region54: #{tpu_custom_call.1} parent=51 // pred_check_branch
          %384 = sbr.rel (%p382) target = $region56
        $region55: #{tpu_custom_call.1} parent=51 // pred_region
          %s385 = sand.u32 %s120, 1
          %s386 = scalar_lea.sflag [#allocation4], %s385
          %s387 = sand.u32 %s120, 1
          %s388 = smul.addr %s387, 8
          %s389 = scalar_lea.vmem [#allocation7], %s388
          %390 = dma.done %s386, 128
        $region56: #{tpu_custom_call.1} parent=51 // pred_fallthru
          _
      $region52: #{tpu_custom_call.1} parent=5 // pred_fallthru
        _
    $region6: #{tpu_custom_call.1} parent=1 // loop_footer
      %s21 = sadd.s32 1, %s17
    $region7: #{tpu_custom_call.1} parent=1 // loop_footer_branch
      %16 = sbr.rel target = $region3
    $region8: #{tpu_custom_call.1} parent=1 // loop_exit
      _
    %391 = vsyncpa [#allocation3], 1
    %s392 = scalar_lea.sflag [#allocation3], 1
    %393 = vsyncpa %s392, 1
    %394 = vsyncpa [#allocation6], 1
    %395 = vsyncpa [#allocation4], 1
    %s396 = scalar_lea.sflag [#allocation4], 1
    %397 = vsyncpa %s396, 1

</llo_original>
